<compile_context>
chip_gen: v5e
topology: v5e:2x2
jax: 0.10.0
libtpu: 0.0.40
codegen_flags: <defaults>
</compile_context>

<pallas_src>
import functools

import jax
import jax.numpy as jnp
import numpy as np
from jax.experimental import pallas as pl
from jax.experimental.pallas import tpu as pltpu


# ----------------------------- Pallas kernel --------------------------------

def resnet_block_kernel(xw_ref, w3_ref, wf_ref, b3_ref, bf_ref, o_ref, *,
                        tT, dil):
    # xw_ref : (1, 1, C, tT + 2*dil)  reflection-padded bf16 window (with halo)
    # w3_ref : (C, 3C)  fused dilated-conv taps [W0 | W1 | W2]
    # wf_ref : (C, 2C)  fused [1x1 tail conv | 1x1 shortcut conv]
    # b3_ref : (C, 1)   dilated-conv bias
    # bf_ref : (C, 1)   b_tail + b_shortcut
    # o_ref  : (1, C, tT)
    d = dil
    xw = xw_ref[0, 0]                                   # (C, tT + 2d) bf16

    # LeakyReLU commutes with reflection padding -> apply on the padded window.
    hp = jnp.where(xw > 0, xw, xw * 0.2)                # bf16

    # Dilated k=3 conv as one matmul: [W0|W1|W2] @ [hp0; hp1; hp2]
    rhs1 = jnp.concatenate(
        [hp[:, 0:tT], hp[:, d:d + tT], hp[:, 2 * d:2 * d + tT]], axis=0)
    acc = jnp.dot(w3_ref[...], rhs1,
                  preferred_element_type=jnp.float32)   # (C, tT) f32
    acc = acc + b3_ref[...]

    # LeakyReLU -> fused [tail 1x1 conv ; shortcut 1x1 conv on raw x]
    h2 = jnp.where(acc > 0, acc, 0.2 * acc).astype(jnp.bfloat16)
    x_sc = xw[:, d:d + tT]                              # raw x tile (bf16)
    rhs2 = jnp.concatenate([h2, x_sc], axis=0)          # (2C, tT) bf16
    out = jnp.dot(wf_ref[...], rhs2,
                  preferred_element_type=jnp.float32)   # (C, tT) f32
    out = out + bf_ref[...]

    o_ref[0] = out.astype(o_ref.dtype)


def _pick_time_tile(T):
    # Biggest tile that divides T keeps per-step overhead low while staying
    # lane-dense (multiples of 128 on the lane axis).
    for cand in (512, 256, 128):
        if T % cand == 0:
            return cand
    return T    # small T: single full-length tile (block == full dim is legal)


def resnet_block_pallas(x_ncl, params, dilation, t_tile=None):
    """x_ncl: (B, C, T) float32 (PyTorch NCL layout). Returns (B, C, T) f32."""
    B, C, T = x_ncl.shape
    d = dilation
    w3, b3, w1, b1, ws, bs = params

    tT = _pick_time_tile(T) if t_tile is None else t_tile
    assert T % tT == 0, "time tile must divide T"
    nT = T // tT

    # Reflection pad along time and cut into overlapping per-tile windows
    # (single wrapper pass; gives every grid step its halo through plain
    #  Blocked indexing). Stored as bf16 — the MXU consumes bf16 anyway, and
    #  this halves the kernel's HBM input traffic.
    xpad = jnp.pad(x_ncl, ((0, 0), (0, 0), (d, d)), mode="reflect")
    xwin = jnp.stack(
        [xpad[:, :, t * tT: t * tT + tT + 2 * d] for t in range(nT)],
        axis=1).astype(jnp.bfloat16)                     # (B, nT, C, tT + 2d)

    # Conv weights (O, I, K) -> fused matmul operands (NCL layout: y = W @ x).
    w3cat = jnp.concatenate([w3[:, :, 0], w3[:, :, 1], w3[:, :, 2]],
                            axis=1).astype(jnp.bfloat16)  # (C, 3C)
    wfuse = jnp.concatenate([w1[:, :, 0], ws[:, :, 0]],
                            axis=1).astype(jnp.bfloat16)  # (C, 2C)
    b3c = b3.reshape(C, 1).astype(jnp.float32)
    bfc = (b1 + bs).reshape(C, 1).astype(jnp.float32)

    kernel = functools.partial(resnet_block_kernel, tT=tT, dil=d)

    return pl.pallas_call(
        kernel,
        out_shape=jax.ShapeDtypeStruct((B, C, T), jnp.float32),
        grid_spec=pltpu.PrefetchScalarGridSpec(
            num_scalar_prefetch=0,
            grid=(B, nT),
            in_specs=[
                pl.BlockSpec((1, 1, C, tT + 2 * d), lambda b, t: (b, t, 0, 0)),
                pl.BlockSpec((C, 3 * C), lambda b, t: (0, 0)),
                pl.BlockSpec((C, 2 * C), lambda b, t: (0, 0)),
                pl.BlockSpec((C, 1), lambda b, t: (0, 0)),
                pl.BlockSpec((C, 1), lambda b, t: (0, 0)),
            ],
            out_specs=pl.BlockSpec((1, C, tT), lambda b, t: (b, 0, t)),
        ),
        compiler_params=pltpu.CompilerParams(
            dimension_semantics=("parallel", "parallel")),
    )(xwin, w3cat, wfuse, b3c, bfc)


# ---------------- parameter init (deterministic, weight_norm applied) -------

def weight_norm_weight(v, g):
    # PyTorch weight_norm default dim=0: norm over (in, k) per output channel.
    nrm = jnp.sqrt(jnp.sum(v * v, axis=(1, 2), keepdims=True))
    return g[:, None, None] * v / nrm


def make_params(key, dim):
    ks = jax.random.split(key, 9)
    # dilated k=3 conv
    v3 = jax.random.normal(ks[0], (dim, dim, 3), jnp.float32)
    g3 = 0.5 + jax.random.uniform(ks[1], (dim,), jnp.float32)
    b3 = 0.1 * jax.random.normal(ks[2], (dim,), jnp.float32)
    # 1x1 conv (block tail)
    v1 = jax.random.normal(ks[3], (dim, dim, 1), jnp.float32)
    g1 = 0.5 + jax.random.uniform(ks[4], (dim,), jnp.float32)
    b1 = 0.1 * jax.random.normal(ks[5], (dim,), jnp.float32)
    # 1x1 conv (shortcut)
    vs = jax.random.normal(ks[6], (dim, dim, 1), jnp.float32)
    gs = 0.5 + jax.random.uniform(ks[7], (dim,), jnp.float32)
    bs = 0.1 * jax.random.normal(ks[8], (dim,), jnp.float32)
    return (weight_norm_weight(v3, g3), b3,
            weight_norm_weight(v1, g1), b1,
            weight_norm_weight(vs, gs), bs)


# ---------------- pure-JAX reference (for correctness check) ----------------

def _leaky_relu_f32(v):
    return jnp.where(v > 0, v, 0.2 * v)


def ref_forward(x_ncl, params, dilation):
    w3, b3, w1, b1, ws, bs = params
    dn = ("NCH", "OIH", "NCH")
    hi = jax.lax.Precision.HIGHEST

    h = _leaky_relu_f32(x_ncl)
    hp = jnp.pad(h, ((0, 0), (0, 0), (dilation, dilation)), mode="reflect")
    y1 = jax.lax.conv_general_dilated(
        hp, w3, window_strides=(1,), padding="VALID",
        rhs_dilation=(dilation,), dimension_numbers=dn,
        precision=hi) + b3[None, :, None]
    h2 = _leaky_relu_f32(y1)
    y2 = jax.lax.conv_general_dilated(
        h2, w1, window_strides=(1,), padding="VALID",
        dimension_numbers=dn, precision=hi) + b1[None, :, None]
    sc = jax.lax.conv_general_dilated(
        x_ncl, ws, window_strides=(1,), padding="VALID",
        dimension_numbers=dn, precision=hi) + bs[None, :, None]
    return sc + y2


if __name__ == "__main__":
    B, DIM, T, DILATION = 2, 64, 256, 2

    key = jax.random.PRNGKey(0)
    kx, kp = jax.random.split(key)
    x = jax.random.normal(kx, (B, DIM, T), jnp.float32)   # NCL, as in PyTorch
    params = make_params(kp, DIM)

    # t_tile=128 -> grid (B, 2): exercises the halo-windowed time-tiling path.
    out = resnet_block_pallas(x, params, DILATION, t_tile=128)
    out = jax.block_until_ready(out)

    ref = jax.block_until_ready(ref_forward(x, params, DILATION))
    # Kernel uses bf16 MXU inputs with f32 accumulation -> looser tolerance
    # than the f32 HIGHEST-precision reference.
    np.testing.assert_allclose(np.asarray(out), np.asarray(ref),
                               rtol=3e-2, atol=5e-2)

    print("KERNEL_OK")
</pallas_src>

<mosaic_0001>
module attributes {stable_mosaic.version = 11 : i64} {
  func.func @resnet_block_kernel(%arg0: i32, %arg1: i32, %arg2: memref<1x1x64x132xbf16, #tpu.memory_space<vmem>>, %arg3: memref<64x192xbf16, #tpu.memory_space<vmem>>, %arg4: memref<64x128xbf16, #tpu.memory_space<vmem>>, %arg5: memref<64x1xf32, #tpu.memory_space<vmem>>, %arg6: memref<64x1xf32, #tpu.memory_space<vmem>>, %arg7: memref<1x64x128xf32, #tpu.memory_space<vmem>>) attributes {dimension_semantics = [#tpu.dimension_semantics<parallel>, #tpu.dimension_semantics<parallel>], iteration_bounds = array<i64: 2, 2>, scalar_prefetch = 0 : i64, scratch_operands = 0 : i64, tpu.core_type = #tpu.core_type<tc>, window_params = [{transform_indices = @transform_0, window_bounds = array<i64: 1, 1, 64, 132>}, {pipeline_mode = #tpu.pipeline_mode<synchronous>, transform_indices = @transform_1, window_bounds = array<i64: 64, 192>}, {pipeline_mode = #tpu.pipeline_mode<synchronous>, transform_indices = @transform_2, window_bounds = array<i64: 64, 128>}, {pipeline_mode = #tpu.pipeline_mode<synchronous>, transform_indices = @transform_3, window_bounds = array<i64: 64, 1>}, {pipeline_mode = #tpu.pipeline_mode<synchronous>, transform_indices = @transform_4, window_bounds = array<i64: 64, 1>}, {transform_indices = @transform_5, window_bounds = array<i64: 1, 64, 128>}]} {
    %c0 = arith.constant 0 : index
    %c0_0 = arith.constant 0 : index
    %c0_1 = arith.constant 0 : index
    %c0_2 = arith.constant 0 : index
    %0 = vector.load %arg2[%c0, %c0_0, %c0_1, %c0_2] : memref<1x1x64x132xbf16, #tpu.memory_space<vmem>>, vector<1x1x64x132xbf16>
    %1 = vector.shape_cast %0 : vector<1x1x64x132xbf16> to vector<64x132xbf16>
    %cst = arith.constant 0.000000e+00 : bf16
    %2 = vector.broadcast %cst : bf16 to vector<64x132xbf16>
    %3 = arith.cmpf ogt, %1, %2 : vector<64x132xbf16>
    %cst_3 = arith.constant 2.001950e-01 : bf16
    %4 = vector.broadcast %cst_3 : bf16 to vector<64x132xbf16>
    %5 = arith.mulf %1, %4 : vector<64x132xbf16>
    %6 = arith.select %3, %1, %5 : vector<64x132xi1>, vector<64x132xbf16>
    %7 = vector.extract_strided_slice %6 {offsets = [0, 0], sizes = [64, 128], strides = [1, 1]} : vector<64x132xbf16> to vector<64x128xbf16>
    %8 = vector.extract_strided_slice %6 {offsets = [0, 2], sizes = [64, 128], strides = [1, 1]} : vector<64x132xbf16> to vector<64x128xbf16>
    %9 = vector.extract_strided_slice %6 {offsets = [0, 4], sizes = [64, 128], strides = [1, 1]} : vector<64x132xbf16> to vector<64x128xbf16>
    %10 = tpu.concatenate %7, %8, %9 in 0 : vector<64x128xbf16>, vector<64x128xbf16>, vector<64x128xbf16> -> vector<192x128xbf16>
    %c0_4 = arith.constant 0 : index
    %c0_5 = arith.constant 0 : index
    %11 = vector.load %arg3[%c0_4, %c0_5] : memref<64x192xbf16, #tpu.memory_space<vmem>>, vector<64x192xbf16>
    %cst_6 = arith.constant dense<0.000000e+00> : vector<64x128xf32>
    %12 = tpu.matmul %11, %10, %cst_6 {dimension_numbers = #tpu.dot_dimension_numbers<[1], [0], [0], [1], [0, 0, 1, 1], [], []>} : vector<64x192xbf16>, vector<192x128xbf16>, vector<64x128xf32> -> vector<64x128xf32>
    %c0_7 = arith.constant 0 : index
    %c0_8 = arith.constant 0 : index
    %13 = vector.load %arg5[%c0_7, %c0_8] : memref<64x1xf32, #tpu.memory_space<vmem>>, vector<64x1xf32>
    %14 = vector.broadcast %13 : vector<64x1xf32> to vector<64x128xf32>
    %15 = arith.addf %12, %14 : vector<64x128xf32>
    %cst_9 = arith.constant 0.000000e+00 : f32
    %16 = vector.broadcast %cst_9 : f32 to vector<64x128xf32>
    %17 = arith.cmpf ogt, %15, %16 : vector<64x128xf32>
    %cst_10 = arith.constant 2.000000e-01 : f32
    %18 = vector.broadcast %cst_10 : f32 to vector<64x128xf32>
    %19 = arith.mulf %18, %15 : vector<64x128xf32>
    %20 = arith.select %17, %15, %19 : vector<64x128xi1>, vector<64x128xf32>
    %21 = arith.truncf %20 : vector<64x128xf32> to vector<64x128xbf16>
    %22 = vector.extract_strided_slice %1 {offsets = [0, 2], sizes = [64, 128], strides = [1, 1]} : vector<64x132xbf16> to vector<64x128xbf16>
    %23 = tpu.concatenate %21, %22 in 0 : vector<64x128xbf16>, vector<64x128xbf16> -> vector<128x128xbf16>
    %c0_11 = arith.constant 0 : index
    %c0_12 = arith.constant 0 : index
    %24 = vector.load %arg4[%c0_11, %c0_12] : memref<64x128xbf16, #tpu.memory_space<vmem>>, vector<64x128xbf16>
    %cst_13 = arith.constant dense<0.000000e+00> : vector<64x128xf32>
    %25 = tpu.matmul %24, %23, %cst_13 {dimension_numbers = #tpu.dot_dimension_numbers<[1], [0], [0], [1], [0, 0, 1, 1], [], []>} : vector<64x128xbf16>, vector<128x128xbf16>, vector<64x128xf32> -> vector<64x128xf32>
    %c0_14 = arith.constant 0 : index
    %c0_15 = arith.constant 0 : index
    %26 = vector.load %arg6[%c0_14, %c0_15] : memref<64x1xf32, #tpu.memory_space<vmem>>, vector<64x1xf32>
    %27 = vector.broadcast %26 : vector<64x1xf32> to vector<64x128xf32>
    %28 = arith.addf %25, %27 : vector<64x128xf32>
    %c0_16 = arith.constant 0 : index
    %c0_17 = arith.constant 0 : index
    %c0_18 = arith.constant 0 : index
    %29 = vector.load %arg7[%c0_16, %c0_17, %c0_18] : memref<1x64x128xf32, #tpu.memory_space<vmem>>, vector<1x64x128xf32>
    %30 = vector.shape_cast %29 : vector<1x64x128xf32> to vector<64x128xf32>
    %31 = vector.shape_cast %28 : vector<64x128xf32> to vector<1x64x128xf32>
    tpu.vector_store %arg7[%c0_16, %c0_17, %c0_18], %31 {strides = array<i32>} : memref<1x64x128xf32, #tpu.memory_space<vmem>>, vector<1x64x128xf32>,
    return
  }
  func.func @transform_0(%arg0: i32, %arg1: i32) -> (i32, i32, i32, i32) {
    %c0_i32 = arith.constant 0 : i32
    %c0_i32_0 = arith.constant 0 : i32
    %c0_i32_1 = arith.constant 0 : i32
    return %arg0, %arg1, %c0_i32, %c0_i32_0 : i32, i32, i32, i32
  }
  func.func @transform_1(%arg0: i32, %arg1: i32) -> (i32, i32) {
    %c0_i32 = arith.constant 0 : i32
    %c0_i32_0 = arith.constant 0 : i32
    %c0_i32_1 = arith.constant 0 : i32
    return %c0_i32, %c0_i32_0 : i32, i32
  }
  func.func @transform_2(%arg0: i32, %arg1: i32) -> (i32, i32) {
    %c0_i32 = arith.constant 0 : i32
    %c0_i32_0 = arith.constant 0 : i32
    %c0_i32_1 = arith.constant 0 : i32
    return %c0_i32, %c0_i32_0 : i32, i32
  }
  func.func @transform_3(%arg0: i32, %arg1: i32) -> (i32, i32) {
    %c0_i32 = arith.constant 0 : i32
    %c0_i32_0 = arith.constant 0 : i32
    %c0_i32_1 = arith.constant 0 : i32
    return %c0_i32, %c0_i32_0 : i32, i32
  }
  func.func @transform_4(%arg0: i32, %arg1: i32) -> (i32, i32) {
    %c0_i32 = arith.constant 0 : i32
    %c0_i32_0 = arith.constant 0 : i32
    %c0_i32_1 = arith.constant 0 : i32
    return %c0_i32, %c0_i32_0 : i32, i32
  }
  func.func @transform_5(%arg0: i32, %arg1: i32) -> (i32, i32, i32) {
    %c0_i32 = arith.constant 0 : i32
    %c0_i32_0 = arith.constant 0 : i32
    return %arg0, %c0_i32, %arg1 : i32, i32, i32
  }
}

</mosaic_0001>

<llo_original>
// kernel: tpu_custom_call.1
$region0: #{tpu_custom_call.1}
  #allocation0 [shape = 'u32[]', space=smem, size = 0x4, offset = 0x4, fixed_abs, tag = 'smem constant byte address 0x4 - core index']
  #allocation1 [shape = 'u32[72,128]{1,0:T(1,128)}', space=vmem, size = 0x9000, scoped, tag = 'internal scratch']
  %s0 = inlined_call_operand.hbm [shape: bf16[2,2,64,132], index: 0, kind: input, shape index: {}]
  %s1 = inlined_call_operand.vmem [shape: bf16[64,192], index: 1, kind: input, shape index: {}]
  %s2 = inlined_call_operand.vmem [shape: bf16[64,128], index: 2, kind: input, shape index: {}]
  %s3 = inlined_call_operand.vmem [shape: f32[64,1], index: 3, kind: input, shape index: {}]
  %s4 = inlined_call_operand.vmem [shape: f32[64,1], index: 4, kind: input, shape index: {}]
  %s5 = inlined_call_operand.hbm [shape: f32[2,64,256], index: 5, kind: output, shape index: {}]
  %s6 = sld [smem:[#allocation0]]
  $region57: #{tpu_custom_call.1} parent=0
    _
  %s8 = ssub.s32 1, %s6
  %s9 = scalar_select 0, %s8, %s6
  $region1: #{tpu_custom_call.1} parent=0
    #allocation2 [shape = 'u8[65536]{0}', space=vmem, size = 0x10000, scoped, tag = 'input window, operand 0']
    #allocation3 [shape = 's32[2]{0}', space=sflag, size = 0x8, scoped, tag = 'scoped memory for tpu_custom_call.1']
    #allocation4 [shape = 's32[2]{0}', space=sflag, size = 0x8, scoped, tag = 'scoped memory for tpu_custom_call.1']
    #allocation5 [shape = 'u8[65536]{0}', space=vmem, size = 0x10000, scoped, tag = 'output window, operand 0']
    %10 = vsyncpa [#allocation3], 0
    %s11 = scalar_lea.sflag [#allocation3], 1
    %12 = vsyncpa %s11, 0
    %13 = vsyncpa [#allocation4], 0
    %s14 = scalar_lea.sflag [#allocation4], 1
    %15 = vsyncpa %s14, 0
    loop: start=0, step=1, limit=6
    $region2: #{tpu_custom_call.1} parent=1 // loop_pre_header
      _
    $region3: #{tpu_custom_call.1} parent=1 // loop_header
      %s17 = sphi 0, %s21
      %p18 = scmp.ge.s32.totalorder %s17, 6
      %s24 = sphi 0, %s36
      %s25 = sphi 0, %s32
      %s26 = sphi 0, %s24
      %s27 = sphi 0, %s25
      %s28 = sphi 0, %s26
      %s29 = sphi 0, %s27
      %s41 = sphi 0, %s43
      %s44 = sphi 0, %s41
      %s45 = sphi 0, %s44
      %s61 = sphi 0, %s45
      %s65 = sphi 0, %s65
      %s67 = sphi 0, %s65
      %s68 = sphi 0, %s67
      %s82 = sphi 0, %s68
      %s86 = sphi 0, %s86
      %s88 = sphi 0, %s86
      %s89 = sphi 0, %s88
      %s103 = sphi 0, %s89
      %s107 = sphi 0, %s107
      %s109 = sphi 0, %s107
      %s110 = sphi 0, %s109
      %s124 = sphi 0, %s110
      %s128 = sphi 0, %s128
      %s130 = sphi 0, %s128
      %s131 = sphi 0, %s130
      %s145 = sphi 0, %s131
      %s153 = sphi 0, %s155
      %s156 = sphi 0, %s153
      %s157 = sphi 0, %s156
      %s173 = sphi 0, %s157
    $region4: #{tpu_custom_call.1} parent=1 // loop_header_branch
      %20 = sbr.rel (%p18) target = $region8
    $region5: #{tpu_custom_call.1} parent=1 // loop_body
      %s22 = ssub.s32 %s17, 1
      %s23 = ssub.s32 %s17, 2
      %s30 = sadd.s32 1, %s25
      %p31 = scmp.ge.s32.totalorder %s30, 2
      %s32 = scalar_select %p31, 0, %s30
      %s33 = sadd.s32 1, %s24
      %s34 = scalar_select %p31, %s33, %s24
      %p35 = scmp.ge.s32.totalorder %s34, 2
      %s36 = scalar_select %p35, 0, %s34
      %s37 = ssub.s32 %s24, %s36
      %s38 = ssub.s32 %s25, %s32
      %s39 = sor.u32 %s37, %s38
      %p40 = scmp.eq.s32.totalorder %s39, 0
      %s42 = sadd.s32 %s41, 1
      %s43 = scalar_select %p40, %s41, %s42
      %p46 = pneg %p40
      %p47 = scmp.eq.s32.totalorder %s17, 3
      %p48 = por %p46, %p47
      %p49 = scmp.ne.s32.totalorder %s41, %s44
      %p50 = scmp.eq.s32.totalorder %s17, 0
      %p51 = por %p49, %p50
      %p52 = scmp.ne.s32.totalorder %s41, %s44
      %p53 = scmp.eq.s32.totalorder %s22, 3
      %p54 = por %p52, %p53
      %p55 = scmp.ne.s32.totalorder %s44, %s45
      %p56 = scmp.eq.s32.totalorder %s22, 0
      %p57 = por %p55, %p56
      %p58 = scmp.ne.s32.totalorder %s44, %s45
      %p59 = scmp.eq.s32.totalorder %s23, 3
      %p60 = por %p58, %p59
      %p62 = scmp.ne.s32.totalorder %s45, %s61
      %p63 = scmp.eq.s32.totalorder %s23, 0
      %p64 = por %p62, %p63
      %s66 = sadd.s32 %s65, 1
      %p69 = scmp.eq.s32.totalorder %s17, 3
      %p70 = scmp.ne.s32.totalorder %s65, %s67
      %p71 = scmp.eq.s32.totalorder %s17, 0
      %p72 = por %p70, %p71
      %p73 = scmp.ne.s32.totalorder %s65, %s67
      %p74 = scmp.eq.s32.totalorder %s22, 3
      %p75 = por %p73, %p74
      %p76 = scmp.ne.s32.totalorder %s67, %s68
      %p77 = scmp.eq.s32.totalorder %s22, 0
      %p78 = por %p76, %p77
      %p79 = scmp.ne.s32.totalorder %s67, %s68
      %p80 = scmp.eq.s32.totalorder %s23, 3
      %p81 = por %p79, %p80
      %p83 = scmp.ne.s32.totalorder %s68, %s82
      %p84 = scmp.eq.s32.totalorder %s23, 0
      %p85 = por %p83, %p84
      %s87 = sadd.s32 %s86, 1
      %p90 = scmp.eq.s32.totalorder %s17, 3
      %p91 = scmp.ne.s32.totalorder %s86, %s88
      %p92 = scmp.eq.s32.totalorder %s17, 0
      %p93 = por %p91, %p92
      %p94 = scmp.ne.s32.totalorder %s86, %s88
      %p95 = scmp.eq.s32.totalorder %s22, 3
      %p96 = por %p94, %p95
      %p97 = scmp.ne.s32.totalorder %s88, %s89
      %p98 = scmp.eq.s32.totalorder %s22, 0
      %p99 = por %p97, %p98
      %p100 = scmp.ne.s32.totalorder %s88, %s89
      %p101 = scmp.eq.s32.totalorder %s23, 3
      %p102 = por %p100, %p101
      %p104 = scmp.ne.s32.totalorder %s89, %s103
      %p105 = scmp.eq.s32.totalorder %s23, 0
      %p106 = por %p104, %p105
      %s108 = sadd.s32 %s107, 1
      %p111 = scmp.eq.s32.totalorder %s17, 3
      %p112 = scmp.ne.s32.totalorder %s107, %s109
      %p113 = scmp.eq.s32.totalorder %s17, 0
      %p114 = por %p112, %p113
      %p115 = scmp.ne.s32.totalorder %s107, %s109
      %p116 = scmp.eq.s32.totalorder %s22, 3
      %p117 = por %p115, %p116
      %p118 = scmp.ne.s32.totalorder %s109, %s110
      %p119 = scmp.eq.s32.totalorder %s22, 0
      %p120 = por %p118, %p119
      %p121 = scmp.ne.s32.totalorder %s109, %s110
      %p122 = scmp.eq.s32.totalorder %s23, 3
      %p123 = por %p121, %p122
      %p125 = scmp.ne.s32.totalorder %s110, %s124
      %p126 = scmp.eq.s32.totalorder %s23, 0
      %p127 = por %p125, %p126
      %s129 = sadd.s32 %s128, 1
      %p132 = scmp.eq.s32.totalorder %s17, 3
      %p133 = scmp.ne.s32.totalorder %s128, %s130
      %p134 = scmp.eq.s32.totalorder %s17, 0
      %p135 = por %p133, %p134
      %p136 = scmp.ne.s32.totalorder %s128, %s130
      %p137 = scmp.eq.s32.totalorder %s22, 3
      %p138 = por %p136, %p137
      %p139 = scmp.ne.s32.totalorder %s130, %s131
      %p140 = scmp.eq.s32.totalorder %s22, 0
      %p141 = por %p139, %p140
      %p142 = scmp.ne.s32.totalorder %s130, %s131
      %p143 = scmp.eq.s32.totalorder %s23, 3
      %p144 = por %p142, %p143
      %p146 = scmp.ne.s32.totalorder %s131, %s145
      %p147 = scmp.eq.s32.totalorder %s23, 0
      %p148 = por %p146, %p147
      %s149 = ssub.s32 %s24, %s36
      %s150 = ssub.s32 %s25, %s32
      %s151 = sor.u32 %s149, %s150
      %p152 = scmp.eq.s32.totalorder %s151, 0
      %s154 = sadd.s32 %s153, 1
      %s155 = scalar_select %p152, %s153, %s154
      %p158 = pneg %p152
      %p159 = scmp.eq.s32.totalorder %s17, 3
      %p160 = por %p158, %p159
      %p161 = scmp.ne.s32.totalorder %s153, %s156
      %p162 = scmp.eq.s32.totalorder %s17, 0
      %p163 = por %p161, %p162
      %p164 = scmp.ne.s32.totalorder %s153, %s156
      %p165 = scmp.eq.s32.totalorder %s22, 3
      %p166 = por %p164, %p165
      %p167 = scmp.ne.s32.totalorder %s156, %s157
      %p168 = scmp.eq.s32.totalorder %s22, 0
      %p169 = por %p167, %p168
      %p170 = scmp.ne.s32.totalorder %s156, %s157
      %p171 = scmp.eq.s32.totalorder %s23, 3
      %p172 = por %p170, %p171
      %p174 = scmp.ne.s32.totalorder %s157, %s173
      %p175 = scmp.eq.s32.totalorder %s23, 0
      %p176 = por %p174, %p175
      %p177 = scmp.le.s32.totalorder 1, %s17
      %p178 = scmp.lt.s32.totalorder %s17, 5
      %p179 = pnand %p177, %p178
      %p180 = pneg %p179
      // Predicated region
      $region9: #{tpu_custom_call.1} parent=5 // pred_check
        _
      $region10: #{tpu_custom_call.1} parent=5 // pred_check_branch
        %182 = sbr.rel (%p179) target = $region12
      $region11: #{tpu_custom_call.1} parent=5 // pred_region
        %s183 = ssub.s32 %s17, 1
        // Predicated region
        $region13: #{tpu_custom_call.1} parent=11 // pred_check
          %p184 = pneg %p78
        $region14: #{tpu_custom_call.1} parent=11 // pred_check_branch
          %186 = sbr.rel (%p184) target = $region16
        $region15: #{tpu_custom_call.1} parent=11 // pred_region
          _
        $region16: #{tpu_custom_call.1} parent=11 // pred_fallthru
          _
        // Predicated region
        $region17: #{tpu_custom_call.1} parent=11 // pred_check
          %p187 = pneg %p99
        $region18: #{tpu_custom_call.1} parent=11 // pred_check_branch
          %189 = sbr.rel (%p187) target = $region20
        $region19: #{tpu_custom_call.1} parent=11 // pred_region
          _
        $region20: #{tpu_custom_call.1} parent=11 // pred_fallthru
          _
        // Predicated region
        $region21: #{tpu_custom_call.1} parent=11 // pred_check
          %p190 = pneg %p120
        $region22: #{tpu_custom_call.1} parent=11 // pred_check_branch
          %192 = sbr.rel (%p190) target = $region24
        $region23: #{tpu_custom_call.1} parent=11 // pred_region
          _
        $region24: #{tpu_custom_call.1} parent=11 // pred_fallthru
          _
        // Predicated region
        $region25: #{tpu_custom_call.1} parent=11 // pred_check
          %p193 = pneg %p141
        $region26: #{tpu_custom_call.1} parent=11 // pred_check_branch
          %195 = sbr.rel (%p193) target = $region28
        $region27: #{tpu_custom_call.1} parent=11 // pred_region
          _
        $region28: #{tpu_custom_call.1} parent=11 // pred_fallthru
          _
      $region12: #{tpu_custom_call.1} parent=5 // pred_fallthru
        _
      %p196 = scmp.lt.s32.totalorder %s17, 4
      // Predicated region
      $region29: #{tpu_custom_call.1} parent=5 // pred_check
        %p197 = pneg %p196
      $region30: #{tpu_custom_call.1} parent=5 // pred_check_branch
        %199 = sbr.rel (%p197) target = $region32
      $region31: #{tpu_custom_call.1} parent=5 // pred_region
        // Predicated region
        $region33: #{tpu_custom_call.1} parent=31 // pred_check
          %p200 = pneg %p51
        $region34: #{tpu_custom_call.1} parent=31 // pred_check_branch
          %202 = sbr.rel (%p200) target = $region36
        $region35: #{tpu_custom_call.1} parent=31 // pred_region
          %s203 = sand.u32 %s41, 1
          %s204 = scalar_lea.sflag [#allocation3], %s203
          %s205 = sand.u32 %s41, 1
          %s206 = smul.addr %s205, 64
          %s207 = scalar_lea.vmem [#allocation2], %s206
          %209 = vsyncadd %s204, 0
          %s210 = smul.addr %s25, 16
          %s211 = smul.addr %s24, 32
          %s212 = sadd.s32 %s210, %s211
          %s213 = smul.addr %s212, 4
          %s214 = scalar_lea.hbm %s0, %s213
          %s215 = sshll.u32 %s214, 4
          %s216 = int_to_ptr.hbm [resolvable:$true] %s215
          %s217 = sshll.u32 %s207, 4
          %s218 = int_to_ptr.vmem [resolvable:$true] %s217
          %223 = dma.hbm_to_vmem [thread:$0]  %s216, 1024, %s218, %s204, 128, 128, 8
        $region36: #{tpu_custom_call.1} parent=31 // pred_fallthru
          _
      $region32: #{tpu_custom_call.1} parent=5 // pred_fallthru
        _
      %p224 = scmp.le.s32.totalorder 1, %s17
      %p225 = scmp.lt.s32.totalorder %s17, 5
      %p226 = pnand %p224, %p225
      %p227 = pneg %p226
      // Predicated region
      $region37: #{tpu_custom_call.1} parent=5 // pred_check
        _
      $region38: #{tpu_custom_call.1} parent=5 // pred_check_branch
        %229 = sbr.rel (%p226) target = $region40
      $region39: #{tpu_custom_call.1} parent=5 // pred_region
        %s230 = ssub.s32 %s17, 1
        %s231 = sand.u32 %s44, 1
        %s232 = scalar_lea.sflag [#allocation3], %s231
        %s233 = sand.u32 %s44, 1
        %s234 = smul.addr %s233, 64
        %s235 = scalar_lea.vmem [#allocation2], %s234
        // Predicated region
        $region41: #{tpu_custom_call.1} parent=39 // pred_check
          %p236 = pneg %p57
        $region42: #{tpu_custom_call.1} parent=39 // pred_check_branch
          %238 = sbr.rel (%p236) target = $region44
        $region43: #{tpu_custom_call.1} parent=39 // pred_region
          %240 = dma.done %s232, 1024
        $region44: #{tpu_custom_call.1} parent=39 // pred_fallthru
          _
        %s241 = sand.u32 %s44, 1
        %s242 = scalar_lea.sflag [#allocation3], %s241
        %s243 = sand.u32 %s44, 1
        %s244 = smul.addr %s243, 64
        %s245 = scalar_lea.vmem [#allocation2], %s244
        %p246 = pneg %p57
        %p247 = pneg %p54
        %p248 = pneg %p78
        %p249 = pneg %p75
        %p250 = pneg %p99
        %p251 = pneg %p96
        %p252 = pneg %p120
        %p253 = pneg %p117
        %p254 = pneg %p141
        %p255 = pneg %p138
        %p256 = pneg %p169
        %p257 = pneg %p166
        %s258 = sand.u32 %s156, 1
        %s259 = scalar_lea.sflag [#allocation4], %s258
        %s260 = sand.u32 %s156, 1
        %s261 = smul.addr %s260, 64
        %s262 = scalar_lea.vmem [#allocation5], %s261
        %v264 = vld [vmem:[%s235] sm:$0xff]
        %v265 = vld [vmem:[%s235 + $0x8] sm:$0xff]
        %v266 = vld [vmem:[%s235 + $0x10] sm:$0xff]
        %v267 = vld [vmem:[%s235 + $0x18] sm:$0xff]
        %v268 = vld [vmem:[%s235 + $0x20] sm:$0xff]
        %v269 = vld [vmem:[%s235 + $0x28] sm:$0xff]
        %v270 = vld [vmem:[%s235 + $0x30] sm:$0xff]
        %v271 = vld [vmem:[%s235 + $0x38] sm:$0xff]
        %v272 = vunpack.c.l.bf16 %v264
        %v273 = vunpack.c.h.bf16 %v264
        %v274 = vunpack.c.l.bf16 %v265
        %v275 = vunpack.c.h.bf16 %v265
        %v276 = vunpack.c.l.bf16 %v266
        %v277 = vunpack.c.h.bf16 %v266
        %v278 = vunpack.c.l.bf16 %v267
        %v279 = vunpack.c.h.bf16 %v267
        %v280 = vunpack.c.l.bf16 %v268
        %v281 = vunpack.c.h.bf16 %v268
        %v282 = vunpack.c.l.bf16 %v269
        %v283 = vunpack.c.h.bf16 %v269
        %v284 = vunpack.c.l.bf16 %v270
        %v285 = vunpack.c.h.bf16 %v270
        %v286 = vunpack.c.l.bf16 %v271
        %v287 = vunpack.c.h.bf16 %v271
        %vm288 = vcmp.gt.f32.partialorder %v272, 0.0
        %vm289 = vcmp.gt.f32.partialorder %v273, 0.0
        %vm290 = vcmp.gt.f32.partialorder %v274, 0.0
        %vm291 = vcmp.gt.f32.partialorder %v275, 0.0
        %vm292 = vcmp.gt.f32.partialorder %v276, 0.0
        %vm293 = vcmp.gt.f32.partialorder %v277, 0.0
        %vm294 = vcmp.gt.f32.partialorder %v278, 0.0
        %vm295 = vcmp.gt.f32.partialorder %v279, 0.0
        %vm296 = vcmp.gt.f32.partialorder %v280, 0.0
        %vm297 = vcmp.gt.f32.partialorder %v281, 0.0
        %vm298 = vcmp.gt.f32.partialorder %v282, 0.0
        %vm299 = vcmp.gt.f32.partialorder %v283, 0.0
        %vm300 = vcmp.gt.f32.partialorder %v284, 0.0
        %vm301 = vcmp.gt.f32.partialorder %v285, 0.0
        %vm302 = vcmp.gt.f32.partialorder %v286, 0.0
        %vm303 = vcmp.gt.f32.partialorder %v287, 0.0
        %v304 = vmul.f32 %v272, 0.20019531
        %v305 = vmul.f32 %v273, 0.20019531
        %v306 = vmul.f32 %v274, 0.20019531
        %v307 = vmul.f32 %v275, 0.20019531
        %v308 = vmul.f32 %v276, 0.20019531
        %v309 = vmul.f32 %v277, 0.20019531
        %v310 = vmul.f32 %v278, 0.20019531
        %v311 = vmul.f32 %v279, 0.20019531
        %v312 = vmul.f32 %v280, 0.20019531
        %v313 = vmul.f32 %v281, 0.20019531
        %v314 = vmul.f32 %v282, 0.20019531
        %v315 = vmul.f32 %v283, 0.20019531
        %v316 = vmul.f32 %v284, 0.20019531
        %v317 = vmul.f32 %v285, 0.20019531
        %v318 = vmul.f32 %v286, 0.20019531
        %v319 = vmul.f32 %v287, 0.20019531
        %v320 = vpack.c.bf16 %v305, %v304
        %v321 = vpack.c.bf16 %v307, %v306
        %v322 = vpack.c.bf16 %v309, %v308
        %v323 = vpack.c.bf16 %v311, %v310
        %v324 = vpack.c.bf16 %v313, %v312
        %v325 = vpack.c.bf16 %v315, %v314
        %v326 = vpack.c.bf16 %v317, %v316
        %v327 = vpack.c.bf16 %v319, %v318
        %vm328 = vmpackc.low %vm289, %vm288
        %vm329 = vmpackc.low %vm291, %vm290
        %vm330 = vmpackc.low %vm293, %vm292
        %vm331 = vmpackc.low %vm295, %vm294
        %vm332 = vmpackc.low %vm297, %vm296
        %vm333 = vmpackc.low %vm299, %vm298
        %vm334 = vmpackc.low %vm301, %vm300
        %vm335 = vmpackc.low %vm303, %vm302
        %v336 = vsel %vm328, %v264, %v320
        %v337 = vsel %vm329, %v265, %v321
        %v338 = vsel %vm330, %v266, %v322
        %v339 = vsel %vm331, %v267, %v323
        %v340 = vsel %vm332, %v268, %v324
        %v341 = vsel %vm333, %v269, %v325
        %v342 = vsel %vm334, %v270, %v326
        %v343 = vsel %vm335, %v271, %v327
        %v352 = vunpack.c.l.b16 %v336
        %v353 = vunpack.c.l.b16 %v337
        %v354 = vunpack.c.l.b16 %v338
        %v355 = vunpack.c.l.b16 %v339
        %v356 = vunpack.c.l.b16 %v340
        %v357 = vunpack.c.l.b16 %v341
        %v358 = vunpack.c.l.b16 %v342
        %v359 = vunpack.c.l.b16 %v343
        %v360 = vpack.c.b16 %v353, %v352
        %v361 = vpack.c.b16 %v355, %v354
        %v362 = vpack.c.b16 %v357, %v356
        %v363 = vpack.c.b16 %v359, %v358
        %v368 = vunpack.c.h.b16 %v336
        %v369 = vunpack.c.h.b16 %v337
        %v370 = vunpack.c.h.b16 %v338
        %v371 = vunpack.c.h.b16 %v339
        %v372 = vunpack.c.h.b16 %v340
        %v373 = vunpack.c.h.b16 %v341
        %v374 = vunpack.c.h.b16 %v342
        %v375 = vunpack.c.h.b16 %v343
        %v376 = vpack.c.b16 %v369, %v368
        %v377 = vpack.c.b16 %v371, %v370
        %v378 = vpack.c.b16 %v373, %v372
        %v379 = vpack.c.b16 %v375, %v374
        %380 = vrot.lane.b32.xlu0 %v360, 126
        %v381 = vpop.permute.xlu0 %380
        %382 = vrot.lane.b32.xlu0 %v376, 126
        %v383 = vpop.permute.xlu0 %382
        %384 = vrot.lane.b32.xlu0 %v361, 126
        %v385 = vpop.permute.xlu0 %384
        %386 = vrot.lane.b32.xlu0 %v377, 126
        %v387 = vpop.permute.xlu0 %386
        %388 = vrot.lane.b32.xlu0 %v362, 126
        %v389 = vpop.permute.xlu0 %388
        %390 = vrot.lane.b32.xlu0 %v378, 126
        %v391 = vpop.permute.xlu0 %390
        %392 = vrot.lane.b32.xlu0 %v363, 126
        %v393 = vpop.permute.xlu0 %392
        %394 = vrot.lane.b32.xlu0 %v379, 126
        %v395 = vpop.permute.xlu0 %394
        %vm396 = vcmask 1031168
        %v397 = vsel %vm396, %v381, %v383
        %v398 = vsel %vm396, %v385, %v387
        %v399 = vsel %vm396, %v389, %v391
        %v400 = vsel %vm396, %v393, %v395
        %405 = vrot.lane.b32.xlu0 %v360, 124
        %v406 = vpop.permute.xlu0 %405
        %407 = vrot.lane.b32.xlu0 %v376, 124
        %v408 = vpop.permute.xlu0 %407
        %409 = vrot.lane.b32.xlu0 %v361, 124
        %v410 = vpop.permute.xlu0 %409
        %411 = vrot.lane.b32.xlu0 %v377, 124
        %v412 = vpop.permute.xlu0 %411
        %413 = vrot.lane.b32.xlu0 %v362, 124
        %v414 = vpop.permute.xlu0 %413
        %415 = vrot.lane.b32.xlu0 %v378, 124
        %v416 = vpop.permute.xlu0 %415
        %417 = vrot.lane.b32.xlu0 %v363, 124
        %v418 = vpop.permute.xlu0 %417
        %419 = vrot.lane.b32.xlu0 %v379, 124
        %v420 = vpop.permute.xlu0 %419
        %vm421 = vcmask 1014784
        %v422 = vsel %vm421, %v406, %v408
        %v423 = vsel %vm421, %v410, %v412
        %v424 = vsel %vm421, %v414, %v416
        %v425 = vsel %vm421, %v418, %v420
        %v430 = vld [vmem:[%s1] sm:$0xff]
        %v431 = vld [vmem:[%s1 + $0x8] sm:$0xff]
        %v432 = vld [vmem:[%s1 + $0x10] sm:$0xff]
        %v433 = vld [vmem:[%s1 + $0x18] sm:$0xff]
        %v434 = vld [vmem:[%s1 + $0x20] sm:$0xff]
        %v435 = vld [vmem:[%s1 + $0x28] sm:$0xff]
        %v436 = vld [vmem:[%s1 + $0x30] sm:$0xff]
        %v437 = vld [vmem:[%s1 + $0x38] sm:$0xff]
        %v438 = vld [vmem:[%s3] sm:$0xff]
        %v439 = vld [vmem:[%s3 + $0x8] sm:$0xff]
        %v440 = vld [vmem:[%s3 + $0x10] sm:$0xff]
        %v441 = vld [vmem:[%s3 + $0x18] sm:$0xff]
        %v442 = vld [vmem:[%s3 + $0x20] sm:$0xff]
        %v443 = vld [vmem:[%s3 + $0x28] sm:$0xff]
        %v444 = vld [vmem:[%s3 + $0x30] sm:$0xff]
        %v445 = vld [vmem:[%s3 + $0x38] sm:$0xff]
        %447 = vset.pattern.permute.xlu0 0
        %448 = vperm.xlu0 %447, %v438
        %v449 = vpop.permute.xlu0 %448
        %452 = vset.pattern.permute.xlu0 0
        %453 = vperm.xlu0 %452, %v439
        %v454 = vpop.permute.xlu0 %453
        %457 = vset.pattern.permute.xlu0 0
        %458 = vperm.xlu0 %457, %v440
        %v459 = vpop.permute.xlu0 %458
        %462 = vset.pattern.permute.xlu0 0
        %463 = vperm.xlu0 %462, %v441
        %v464 = vpop.permute.xlu0 %463
        %467 = vset.pattern.permute.xlu0 0
        %468 = vperm.xlu0 %467, %v442
        %v469 = vpop.permute.xlu0 %468
        %472 = vset.pattern.permute.xlu0 0
        %473 = vperm.xlu0 %472, %v443
        %v474 = vpop.permute.xlu0 %473
        %477 = vset.pattern.permute.xlu0 0
        %478 = vperm.xlu0 %477, %v444
        %v479 = vpop.permute.xlu0 %478
        %482 = vset.pattern.permute.xlu0 0
        %483 = vperm.xlu0 %482, %v445
        %v484 = vpop.permute.xlu0 %483
        %v494 = vunpack.c.l.b16 %v430
        %v495 = vunpack.c.h.b16 %v430
        %v496 = vunpack.c.l.b16 %v431
        %v497 = vunpack.c.h.b16 %v431
        %v498 = vunpack.c.l.b16 %v432
        %v499 = vunpack.c.h.b16 %v432
        %v500 = vunpack.c.l.b16 %v433
        %v501 = vunpack.c.h.b16 %v433
        %v502 = vunpack.c.l.b16 %v434
        %v503 = vunpack.c.h.b16 %v434
        %v504 = vunpack.c.l.b16 %v435
        %v505 = vunpack.c.h.b16 %v435
        %v506 = vunpack.c.l.b16 %v436
        %v507 = vunpack.c.h.b16 %v436
        %v508 = vunpack.c.l.b16 %v437
        %v509 = vunpack.c.h.b16 %v437
        %v510 = vpack.c.b16 %v496, %v494
        %v511 = vpack.c.b16 %v497, %v495
        %v512 = vpack.c.b16 %v500, %v498
        %v513 = vpack.c.b16 %v501, %v499
        %v514 = vpack.c.b16 %v504, %v502
        %v515 = vpack.c.b16 %v505, %v503
        %v516 = vpack.c.b16 %v508, %v506
        %v517 = vpack.c.b16 %v509, %v507
        %vm522 = vcmask 523264
        %v524 = vsel %vm522, %v511, 0
        %v527 = vsel %vm522, %v513, 0
        %v530 = vsel %vm522, %v515, 0
        %v533 = vsel %vm522, %v517, 0
        %535 = vmatpush.bf16.msra.mxu0 %v400
        %536 = vmatpush.bf16.msra.mxu0 %v399
        %537 = vmatpush.bf16.msra.mxu0 %v398
        %538 = vmatpush.bf16.msra.mxu0 %v397
        %539 = vmatpush.bf16.msra.mxu0 %v363
        %540 = vmatpush.bf16.msra.mxu0 %v362
        %541 = vmatpush.bf16.msra.mxu0 %v361
        %542 = vmatpush.bf16.msra.mxu0 %v360
        %543 = vmatmul.bf16.gmra.mxu0 %v510
        %v544 = vpop.f32.mrf.mxu0
        %v545 = vadd.f32 %v449, %v544
        %v546 = vpop.f32.mrf.mxu0
        %v547 = vadd.f32 %v454, %v546
        %548 = vmatmul.bf16.gmra.mxu0 %v512
        %v549 = vpop.f32.mrf.mxu0
        %v550 = vadd.f32 %v459, %v549
        %v551 = vpop.f32.mrf.mxu0
        %v552 = vadd.f32 %v464, %v551
        %553 = vmatmul.bf16.gmra.mxu0 %v514
        %v554 = vpop.f32.mrf.mxu0
        %v555 = vadd.f32 %v469, %v554
        %v556 = vpop.f32.mrf.mxu0
        %v557 = vadd.f32 %v474, %v556
        %558 = vmatmul.bf16.gmra.mxu0 %v516
        %v559 = vpop.f32.mrf.mxu0
        %v560 = vadd.f32 %v479, %v559
        %v561 = vpop.f32.mrf.mxu0
        %v562 = vadd.f32 %v484, %v561
        %563 = vdwg.mxu0
        %564 = vmatpush.bf16.msra.mxu0 0
        %565 = vmatpush.bf16.msra.mxu0 0
        %566 = vmatpush.bf16.msra.mxu0 0
        %567 = vmatpush.bf16.msra.mxu0 0
        %568 = vmatpush.bf16.msra.mxu0 %v425
        %569 = vmatpush.bf16.msra.mxu0 %v424
        %570 = vmatpush.bf16.msra.mxu0 %v423
        %571 = vmatpush.bf16.msra.mxu0 %v422
        %572 = vmatmul.bf16.gmra.mxu0 %v524
        %v573 = vpop.f32.mrf.mxu0
        %v574 = vadd.f32 %v545, %v573
        %v575 = vpop.f32.mrf.mxu0
        %v576 = vadd.f32 %v547, %v575
        %577 = vmatmul.bf16.gmra.mxu0 %v527
        %v578 = vpop.f32.mrf.mxu0
        %v579 = vadd.f32 %v550, %v578
        %v580 = vpop.f32.mrf.mxu0
        %v581 = vadd.f32 %v552, %v580
        %582 = vmatmul.bf16.gmra.mxu0 %v530
        %v583 = vpop.f32.mrf.mxu0
        %v584 = vadd.f32 %v555, %v583
        %v585 = vpop.f32.mrf.mxu0
        %v586 = vadd.f32 %v557, %v585
        %587 = vmatmul.bf16.gmra.mxu0 %v533
        %v588 = vpop.f32.mrf.mxu0
        %v589 = vadd.f32 %v560, %v588
        %v590 = vpop.f32.mrf.mxu0
        %v591 = vadd.f32 %v562, %v590
        %592 = vdwg.mxu0
        %vm593 = vcmp.gt.f32.partialorder %v574, 0.0
        %vm594 = vcmp.gt.f32.partialorder %v576, 0.0
        %vm595 = vcmp.gt.f32.partialorder %v579, 0.0
        %vm596 = vcmp.gt.f32.partialorder %v581, 0.0
        %vm597 = vcmp.gt.f32.partialorder %v584, 0.0
        %vm598 = vcmp.gt.f32.partialorder %v586, 0.0
        %vm599 = vcmp.gt.f32.partialorder %v589, 0.0
        %vm600 = vcmp.gt.f32.partialorder %v591, 0.0
        %v601 = vmul.f32 %v574, 0.2
        %v602 = vmul.f32 %v576, 0.2
        %v603 = vmul.f32 %v579, 0.2
        %v604 = vmul.f32 %v581, 0.2
        %v605 = vmul.f32 %v584, 0.2
        %v606 = vmul.f32 %v586, 0.2
        %v607 = vmul.f32 %v589, 0.2
        %v608 = vmul.f32 %v591, 0.2
        %v609 = vsel %vm593, %v574, %v601
        %v610 = vsel %vm594, %v576, %v602
        %v611 = vsel %vm595, %v579, %v603
        %v612 = vsel %vm596, %v581, %v604
        %v613 = vsel %vm597, %v584, %v605
        %v614 = vsel %vm598, %v586, %v606
        %v615 = vsel %vm599, %v589, %v607
        %v616 = vsel %vm600, %v591, %v608
        %v617 = vpack.c.bf16 %v609, %v609
        %v618 = vpack.c.bf16 %v610, %v610
        %v619 = vpack.c.bf16 %v611, %v611
        %v620 = vpack.c.bf16 %v612, %v612
        %v621 = vpack.c.bf16 %v613, %v613
        %v622 = vpack.c.bf16 %v614, %v614
        %v623 = vpack.c.bf16 %v615, %v615
        %v624 = vpack.c.bf16 %v616, %v616
        %v633 = vunpack.c.l.b16 %v617
        %v634 = vunpack.c.l.b16 %v618
        %v635 = vunpack.c.l.b16 %v619
        %v636 = vunpack.c.l.b16 %v620
        %v637 = vunpack.c.l.b16 %v621
        %v638 = vunpack.c.l.b16 %v622
        %v639 = vunpack.c.l.b16 %v623
        %v640 = vunpack.c.l.b16 %v624
        %v641 = vpack.c.b16 %v634, %v633
        %v642 = vpack.c.b16 %v636, %v635
        %v643 = vpack.c.b16 %v638, %v637
        %v644 = vpack.c.b16 %v640, %v639
        %v657 = vunpack.c.l.b16 %v264
        %v658 = vunpack.c.h.b16 %v264
        %v659 = vunpack.c.l.b16 %v265
        %v660 = vunpack.c.h.b16 %v265
        %v661 = vunpack.c.l.b16 %v266
        %v662 = vunpack.c.h.b16 %v266
        %v663 = vunpack.c.l.b16 %v267
        %v664 = vunpack.c.h.b16 %v267
        %v665 = vunpack.c.l.b16 %v268
        %v666 = vunpack.c.h.b16 %v268
        %v667 = vunpack.c.l.b16 %v269
        %v668 = vunpack.c.h.b16 %v269
        %v669 = vunpack.c.l.b16 %v270
        %v670 = vunpack.c.h.b16 %v270
        %v671 = vunpack.c.l.b16 %v271
        %v672 = vunpack.c.h.b16 %v271
        %v673 = vpack.c.b16 %v659, %v657
        %v674 = vpack.c.b16 %v660, %v658
        %v675 = vpack.c.b16 %v663, %v661
        %v676 = vpack.c.b16 %v664, %v662
        %v677 = vpack.c.b16 %v667, %v665
        %v678 = vpack.c.b16 %v668, %v666
        %v679 = vpack.c.b16 %v671, %v669
        %v680 = vpack.c.b16 %v672, %v670
        %681 = vrot.lane.b32.xlu0 %v673, 126
        %v682 = vpop.permute.xlu0 %681
        %683 = vrot.lane.b32.xlu0 %v674, 126
        %v684 = vpop.permute.xlu0 %683
        %685 = vrot.lane.b32.xlu0 %v675, 126
        %v686 = vpop.permute.xlu0 %685
        %687 = vrot.lane.b32.xlu0 %v676, 126
        %v688 = vpop.permute.xlu0 %687
        %689 = vrot.lane.b32.xlu0 %v677, 126
        %v690 = vpop.permute.xlu0 %689
        %691 = vrot.lane.b32.xlu0 %v678, 126
        %v692 = vpop.permute.xlu0 %691
        %693 = vrot.lane.b32.xlu0 %v679, 126
        %v694 = vpop.permute.xlu0 %693
        %695 = vrot.lane.b32.xlu0 %v680, 126
        %v696 = vpop.permute.xlu0 %695
        %v697 = vsel %vm396, %v682, %v684
        %v698 = vsel %vm396, %v686, %v688
        %v699 = vsel %vm396, %v690, %v692
        %v700 = vsel %vm396, %v694, %v696
        %v705 = vld [vmem:[%s2] sm:$0xf]
        %v706 = vld [vmem:[%s2 + $0x4] sm:$0xf]
        %v707 = vld [vmem:[%s2 + $0x8] sm:$0xf]
        %v708 = vld [vmem:[%s2 + $0xc] sm:$0xf]
        %v709 = vld [vmem:[%s2 + $0x10] sm:$0xf]
        %v710 = vld [vmem:[%s2 + $0x14] sm:$0xf]
        %v711 = vld [vmem:[%s2 + $0x18] sm:$0xf]
        %v712 = vld [vmem:[%s2 + $0x1c] sm:$0xf]
        %v713 = vld [vmem:[%s4] sm:$0xff]
        %v714 = vld [vmem:[%s4 + $0x8] sm:$0xff]
        %v715 = vld [vmem:[%s4 + $0x10] sm:$0xff]
        %v716 = vld [vmem:[%s4 + $0x18] sm:$0xff]
        %v717 = vld [vmem:[%s4 + $0x20] sm:$0xff]
        %v718 = vld [vmem:[%s4 + $0x28] sm:$0xff]
        %v719 = vld [vmem:[%s4 + $0x30] sm:$0xff]
        %v720 = vld [vmem:[%s4 + $0x38] sm:$0xff]
        %722 = vset.pattern.permute.xlu0 0
        %723 = vperm.xlu0 %722, %v713
        %v724 = vpop.permute.xlu0 %723
        %727 = vset.pattern.permute.xlu0 0
        %728 = vperm.xlu0 %727, %v714
        %v729 = vpop.permute.xlu0 %728
        %732 = vset.pattern.permute.xlu0 0
        %733 = vperm.xlu0 %732, %v715
        %v734 = vpop.permute.xlu0 %733
        %737 = vset.pattern.permute.xlu0 0
        %738 = vperm.xlu0 %737, %v716
        %v739 = vpop.permute.xlu0 %738
        %742 = vset.pattern.permute.xlu0 0
        %743 = vperm.xlu0 %742, %v717
        %v744 = vpop.permute.xlu0 %743
        %747 = vset.pattern.permute.xlu0 0
        %748 = vperm.xlu0 %747, %v718
        %v749 = vpop.permute.xlu0 %748
        %752 = vset.pattern.permute.xlu0 0
        %753 = vperm.xlu0 %752, %v719
        %v754 = vpop.permute.xlu0 %753
        %757 = vset.pattern.permute.xlu0 0
        %758 = vperm.xlu0 %757, %v720
        %v759 = vpop.permute.xlu0 %758
        %v769 = vunpack.c.l.b16 %v705
        %v770 = vunpack.c.l.b16 %v706
        %v771 = vunpack.c.l.b16 %v707
        %v772 = vunpack.c.l.b16 %v708
        %v773 = vunpack.c.l.b16 %v709
        %v774 = vunpack.c.l.b16 %v710
        %v775 = vunpack.c.l.b16 %v711
        %v776 = vunpack.c.l.b16 %v712
        %v777 = vpack.c.b16 %v770, %v769
        %v778 = vpack.c.b16 %v772, %v771
        %v779 = vpack.c.b16 %v774, %v773
        %v780 = vpack.c.b16 %v776, %v775
        %785 = vmatpush.bf16.msra.mxu0 %v700
        %786 = vmatpush.bf16.msra.mxu0 %v699
        %787 = vmatpush.bf16.msra.mxu0 %v698
        %788 = vmatpush.bf16.msra.mxu0 %v697
        %789 = vmatpush.bf16.msra.mxu0 %v644
        %790 = vmatpush.bf16.msra.mxu0 %v643
        %791 = vmatpush.bf16.msra.mxu0 %v642
        %792 = vmatpush.bf16.msra.mxu0 %v641
        %793 = vmatmul.bf16.gmra.mxu0 %v777
        %v794 = vpop.f32.mrf.mxu0
        %v795 = vadd.f32 %v724, %v794
        %v796 = vpop.f32.mrf.mxu0
        %v797 = vadd.f32 %v729, %v796
        %798 = vmatmul.bf16.gmra.mxu0 %v778
        %v799 = vpop.f32.mrf.mxu0
        %v800 = vadd.f32 %v734, %v799
        %v801 = vpop.f32.mrf.mxu0
        %v802 = vadd.f32 %v739, %v801
        %803 = vmatmul.bf16.gmra.mxu0 %v779
        %v804 = vpop.f32.mrf.mxu0
        %v805 = vadd.f32 %v744, %v804
        %v806 = vpop.f32.mrf.mxu0
        %v807 = vadd.f32 %v749, %v806
        %808 = vmatmul.bf16.gmra.mxu0 %v780
        %v809 = vpop.f32.mrf.mxu0
        %v810 = vadd.f32 %v754, %v809
        %v811 = vpop.f32.mrf.mxu0
        %v812 = vadd.f32 %v759, %v811
        %813 = vdwg.mxu0
        %814 = vst [vmem:[%s262] sm:$0xff] %v795
        %815 = vst [vmem:[%s262 + $0x8] sm:$0xff] %v797
        %816 = vst [vmem:[%s262 + $0x10] sm:$0xff] %v800
        %817 = vst [vmem:[%s262 + $0x18] sm:$0xff] %v802
        %818 = vst [vmem:[%s262 + $0x20] sm:$0xff] %v805
        %819 = vst [vmem:[%s262 + $0x28] sm:$0xff] %v807
        %820 = vst [vmem:[%s262 + $0x30] sm:$0xff] %v810
        %821 = vst [vmem:[%s262 + $0x38] sm:$0xff] %v812
        %s822 = sand.u32 %s156, 1
        %s823 = scalar_lea.sflag [#allocation4], %s822
        %s824 = sand.u32 %s156, 1
        %s825 = smul.addr %s824, 64
        %s826 = scalar_lea.vmem [#allocation5], %s825
        // Predicated region
        $region45: #{tpu_custom_call.1} parent=39 // pred_check
          %p827 = pneg %p166
        $region46: #{tpu_custom_call.1} parent=39 // pred_check_branch
          %829 = sbr.rel (%p827) target = $region48
        $region47: #{tpu_custom_call.1} parent=39 // pred_region
          %831 = vsyncadd %s823, 0
          %s832 = smul.addr %s26, 16
          %s833 = sadd.s32 %s27, %s832
          %s834 = smul.addr %s833, 8
          %s835 = scalar_lea.hbm %s5, %s834
          %s836 = sshll.u32 %s826, 4
          %s837 = int_to_ptr.vmem [resolvable:$true] %s836
          %s838 = sshll.u32 %s835, 4
          %s839 = int_to_ptr.hbm [resolvable:$true] %s838
          %844 = dma.vmem_to_hbm [thread:$0]  %s837, 1024, %s839, %s823, 128, 256, 8
        $region48: #{tpu_custom_call.1} parent=39 // pred_fallthru
          _
      $region40: #{tpu_custom_call.1} parent=5 // pred_fallthru
        _
      %p845 = scmp.le.s32.totalorder 2, %s17
      // Predicated region
      $region49: #{tpu_custom_call.1} parent=5 // pred_check
        %p846 = pneg %p845
      $region50: #{tpu_custom_call.1} parent=5 // pred_check_branch
        %848 = sbr.rel (%p846) target = $region52
      $region51: #{tpu_custom_call.1} parent=5 // pred_region
        %s849 = ssub.s32 %s17, 2
        // Predicated region
        $region53: #{tpu_custom_call.1} parent=51 // pred_check
          %p850 = pneg %p172
        $region54: #{tpu_custom_call.1} parent=51 // pred_check_branch
          %852 = sbr.rel (%p850) target = $region56
        $region55: #{tpu_custom_call.1} parent=51 // pred_region
          %s853 = sand.u32 %s157, 1
          %s854 = scalar_lea.sflag [#allocation4], %s853
          %s855 = sand.u32 %s157, 1
          %s856 = smul.addr %s855, 64
          %s857 = scalar_lea.vmem [#allocation5], %s856
          %859 = dma.done %s854, 1024
        $region56: #{tpu_custom_call.1} parent=51 // pred_fallthru
          _
      $region52: #{tpu_custom_call.1} parent=5 // pred_fallthru
        _
    $region6: #{tpu_custom_call.1} parent=1 // loop_footer
      %s21 = sadd.s32 1, %s17
    $region7: #{tpu_custom_call.1} parent=1 // loop_footer_branch
      %16 = sbr.rel target = $region3
    $region8: #{tpu_custom_call.1} parent=1 // loop_exit
      _
    %860 = vsyncpa [#allocation3], 1
    %s861 = scalar_lea.sflag [#allocation3], 1
    %862 = vsyncpa %s861, 1
    %863 = vsyncpa [#allocation4], 1
    %s864 = scalar_lea.sflag [#allocation4], 1
    %865 = vsyncpa %s864, 1

</llo_original>
